<compile_context>
chip_gen: v6e
topology: v6e:2x2x1
jax: 0.10.0
libtpu: 0.0.40
codegen_flags: <defaults>
</compile_context>

<pallas_src>
import jax
import jax.numpy as jnp
from jax.experimental import pallas as pl
from jax.experimental.pallas import tpu as pltpu

LANE = 128       # lane width (last dim) for padded hidden features
ROW_ALIGN = 16   # batch-tile alignment: multiple of 8 (f32) and 16 (bf16)


def _round_up(n, m):
    return ((n + m - 1) // m) * m


# --------------------------------------------------------------------------
# Kernel: fused 3-layer MLP on one (tm, in_size) batch tile; weights resident.
# MXU matmuls in the weight dtype (f32 or bf16) with f32 accumulation; bias,
# ReLU and tanh in f32 on the VPU/EUP.
# --------------------------------------------------------------------------
def actor_mlp_kernel(x_ref, w1_ref, b1_ref, w2_ref, b2_ref, w3_ref, b3_ref,
                     out_ref):
    cdt = w1_ref.dtype                       # MXU input dtype (f32 or bf16)
    x = x_ref[...].astype(cdt)

    # fc1 + ReLU
    h1 = jnp.dot(x, w1_ref[...], preferred_element_type=jnp.float32)
    h1 = jnp.maximum(h1 + b1_ref[...], 0.0)

    # fc2 + ReLU
    h2 = jnp.dot(h1.astype(cdt), w2_ref[...], preferred_element_type=jnp.float32)
    h2 = jnp.maximum(h2 + b2_ref[...], 0.0)

    # fc3 + tanh (tanh on the EUP slot), stored at the true out_size width
    h3 = jnp.dot(h2.astype(cdt), w3_ref[...], preferred_element_type=jnp.float32)
    out_ref[...] = jnp.tanh(h3 + b3_ref[...]).astype(out_ref.dtype)


# --------------------------------------------------------------------------
# Param prep (done ONCE): pad only the hidden dims (h1, h2) to 128 lanes.
# in_size and out_size stay unpadded so x streams and the output stores
# exactly the bytes the caller needs. Zero padding is exact: padded hidden
# units get zero weights+bias -> relu(0)=0 -> multiply zero rows downstream.
# Weights cast to `dtype` (bf16 halves resident VMEM, bf16-native MXU on
# v5e); biases stay f32 since they add into the f32 accumulator.
# --------------------------------------------------------------------------
def prepare_params(params, dtype=jnp.float32):
    in_size, h1 = params["w1"].shape
    h2 = params["w2"].shape[1]
    out_size = params["w3"].shape[1]
    h1p, h2p = _round_up(h1, LANE), _round_up(h2, LANE)

    def pad_w(w, rp, cp):
        r, c = w.shape
        out = jnp.zeros((rp, cp), dtype)
        return out.at[:r, :c].set(w.astype(dtype))

    def pad_b(b, cp):
        c = b.shape[-1]
        out = jnp.zeros((1, cp), jnp.float32)
        return out.at[0, :c].set(b.reshape(-1).astype(jnp.float32))

    return dict(
        w1=pad_w(params["w1"], in_size, h1p), b1=pad_b(params["b1"], h1p),
        w2=pad_w(params["w2"], h1p, h2p),     b2=pad_b(params["b2"], h2p),
        w3=pad_w(params["w3"], h2p, out_size), b3=pad_b(params["b3"], out_size),
    )


# --------------------------------------------------------------------------
# Wrapper: grid tiles ONLY the batch axis; weights use a constant index_map
# so they stay VMEM-resident across grid steps.
# --------------------------------------------------------------------------
def actor_network_forward(x, pparams, *, block_batch=None, tile_cap=1024,
                          min_grid_steps=2):
    """x: (batch, in_size), f32 or bf16. pparams: from prepare_params."""
    w1, b1 = pparams["w1"], pparams["b1"]
    w2, b2 = pparams["w2"], pparams["b2"]
    w3, b3 = pparams["w3"], pparams["b3"]

    batch, in_size = x.shape
    assert in_size == w1.shape[0], (in_size, w1.shape)
    out_size = w3.shape[1]

    # Batch tile: balance against the real batch (minimize padded junk rows)
    # and target >= min_grid_steps steps so v7x can shard the 'parallel' axis
    # across its two TensorCores (no-op on single-TC v5e/v6e).
    if block_batch is not None:
        tm = _round_up(block_batch, ROW_ALIGN)
    else:
        nsteps = max(min_grid_steps, pl.cdiv(batch, tile_cap))
        tm = _round_up(pl.cdiv(batch, nsteps), ROW_ALIGN)
        tm = min(tm, _round_up(tile_cap, ROW_ALIGN))
    tm = min(tm, _round_up(batch, ROW_ALIGN))
    batch_pad = _round_up(batch, tm)

    # Only the ragged last tile needs (row-only) zero padding; no lane padding.
    x_in = x if batch_pad == batch else jnp.pad(x, ((0, batch_pad - batch), (0, 0)))

    grid = (batch_pad // tm,)

    def resident(a):  # full array, same block every step -> fetched once
        return pl.BlockSpec(a.shape, lambda i: (0, 0))

    out = pl.pallas_call(
        actor_mlp_kernel,
        out_shape=jax.ShapeDtypeStruct((batch_pad, out_size), x.dtype),
        grid=grid,
        in_specs=[
            # x: tiled on batch; last dim == full array dim (no 128 pad needed)
            pl.BlockSpec((tm, in_size), lambda i: (i, 0)),
            resident(w1), resident(b1),
            resident(w2), resident(b2),
            resident(w3), resident(b3),
        ],
        # narrow output: last dim == full array dim (true action size)
        out_specs=pl.BlockSpec((tm, out_size), lambda i: (i, 0)),
        compiler_params=pltpu.CompilerParams(
            dimension_semantics=("parallel",),   # megacore sharding on v7x
        ),
    )(x_in, w1, b1, w2, b2, w3, b3)

    return out if batch_pad == batch else out[:batch]


# --------------------------------------------------------------------------
# Deterministic synthetic init (PyTorch-Linear-like uniform fan-in), unpadded.
# --------------------------------------------------------------------------
def init_params(key, in_size, h1_size, h2_size, out_size):
    ks = jax.random.split(key, 6)

    def lin(kw, kb, fan_in, fan_out):
        bound = 1.0 / jnp.sqrt(float(fan_in))
        w = jax.random.uniform(kw, (fan_in, fan_out), jnp.float32, -bound, bound)
        b = jax.random.uniform(kb, (fan_out,), jnp.float32, -bound, bound)
        return w, b

    w1, b1 = lin(ks[0], ks[1], in_size, h1_size)
    w2, b2 = lin(ks[2], ks[3], h1_size, h2_size)
    w3, b3 = lin(ks[4], ks[5], h2_size, out_size)
    return dict(w1=w1, b1=b1, w2=w2, b2=b2, w3=w3, b3=b3)


def reference_forward(x, p):
    h1 = jnp.maximum(x @ p["w1"] + p["b1"], 0.0)
    h2 = jnp.maximum(h1 @ p["w2"] + p["b2"], 0.0)
    return jnp.tanh(h2 @ p["w3"] + p["b3"])


if __name__ == "__main__":
    key = jax.random.PRNGKey(0)
    k_x, k_p = jax.random.split(key)

    in_size, h1_size, h2_size, out_size = 24, 64, 32, 4
    params = init_params(k_p, in_size, h1_size, h2_size, out_size)

    batch = 24
    x = jax.random.normal(k_x, (batch, in_size), jnp.float32)
    ref = reference_forward(x, params)

    # f32 path (default tiling: >=2 grid steps, resident weights).
    pparams_f32 = prepare_params(params, dtype=jnp.float32)
    out = jax.block_until_ready(actor_network_forward(x, pparams_f32))
    assert out.shape == (batch, out_size), out.shape
    assert jnp.allclose(out, ref, atol=1e-5, rtol=1e-5)

    # Explicit small tile -> exercises the ragged-last-tile / multi-step path.
    out_tiled = jax.block_until_ready(
        actor_network_forward(x, pparams_f32, block_batch=16))
    assert jnp.allclose(out_tiled, ref, atol=1e-5, rtol=1e-5)

    # bf16 streamed-activation path: halves HBM bytes on x/out, f32 accumulate.
    pparams_bf16 = prepare_params(params, dtype=jnp.bfloat16)
    out_bf16 = jax.block_until_ready(
        actor_network_forward(x.astype(jnp.bfloat16), pparams_bf16))
    assert out_bf16.shape == (batch, out_size), out_bf16.shape
    assert jnp.allclose(out_bf16.astype(jnp.float32), ref, atol=5e-2)

    print("KERNEL_OK")
</pallas_src>

<mosaic_0001>
module attributes {stable_mosaic.version = 11 : i64} {
  func.func @actor_mlp_kernel(%arg0: i32, %arg1: memref<16x24xf32, #tpu.memory_space<vmem>>, %arg2: memref<24x128xf32, #tpu.memory_space<vmem>>, %arg3: memref<1x128xf32, #tpu.memory_space<vmem>>, %arg4: memref<128x128xf32, #tpu.memory_space<vmem>>, %arg5: memref<1x128xf32, #tpu.memory_space<vmem>>, %arg6: memref<128x4xf32, #tpu.memory_space<vmem>>, %arg7: memref<1x4xf32, #tpu.memory_space<vmem>>, %arg8: memref<16x4xf32, #tpu.memory_space<vmem>>) attributes {dimension_semantics = [#tpu.dimension_semantics<parallel>], iteration_bounds = array<i64: 2>, scalar_prefetch = 0 : i64, scratch_operands = 0 : i64, tpu.core_type = #tpu.core_type<tc>, window_params = [{transform_indices = @transform_0, window_bounds = array<i64: 16, 24>}, {pipeline_mode = #tpu.pipeline_mode<synchronous>, transform_indices = @transform_1, window_bounds = array<i64: 24, 128>}, {pipeline_mode = #tpu.pipeline_mode<synchronous>, transform_indices = @transform_2, window_bounds = array<i64: 1, 128>}, {pipeline_mode = #tpu.pipeline_mode<synchronous>, transform_indices = @transform_3, window_bounds = array<i64: 128, 128>}, {pipeline_mode = #tpu.pipeline_mode<synchronous>, transform_indices = @transform_4, window_bounds = array<i64: 1, 128>}, {pipeline_mode = #tpu.pipeline_mode<synchronous>, transform_indices = @transform_5, window_bounds = array<i64: 128, 4>}, {pipeline_mode = #tpu.pipeline_mode<synchronous>, transform_indices = @transform_6, window_bounds = array<i64: 1, 4>}, {transform_indices = @transform_7, window_bounds = array<i64: 16, 4>}]} {
    %c0 = arith.constant 0 : index
    %c0_0 = arith.constant 0 : index
    %0 = vector.load %arg1[%c0, %c0_0] : memref<16x24xf32, #tpu.memory_space<vmem>>, vector<16x24xf32>
    %c0_1 = arith.constant 0 : index
    %c0_2 = arith.constant 0 : index
    %1 = vector.load %arg2[%c0_1, %c0_2] : memref<24x128xf32, #tpu.memory_space<vmem>>, vector<24x128xf32>
    %cst = arith.constant dense<0.000000e+00> : vector<16x128xf32>
    %2 = tpu.matmul %0, %1, %cst {dimension_numbers = #tpu.dot_dimension_numbers<[1], [0], [0], [1], [0, 0, 1, 1], [], []>} : vector<16x24xf32>, vector<24x128xf32>, vector<16x128xf32> -> vector<16x128xf32>
    %c0_3 = arith.constant 0 : index
    %c0_4 = arith.constant 0 : index
    %3 = vector.load %arg3[%c0_3, %c0_4] : memref<1x128xf32, #tpu.memory_space<vmem>>, vector<1x128xf32>
    %4 = vector.broadcast %3 : vector<1x128xf32> to vector<16x128xf32>
    %5 = arith.addf %2, %4 : vector<16x128xf32>
    %cst_5 = arith.constant 0.000000e+00 : f32
    %6 = vector.broadcast %cst_5 : f32 to vector<16x128xf32>
    %7 = arith.maximumf %5, %6 : vector<16x128xf32>
    %c0_6 = arith.constant 0 : index
    %c0_7 = arith.constant 0 : index
    %8 = vector.load %arg4[%c0_6, %c0_7] : memref<128x128xf32, #tpu.memory_space<vmem>>, vector<128x128xf32>
    %cst_8 = arith.constant dense<0.000000e+00> : vector<16x128xf32>
    %9 = tpu.matmul %7, %8, %cst_8 {dimension_numbers = #tpu.dot_dimension_numbers<[1], [0], [0], [1], [0, 0, 1, 1], [], []>} : vector<16x128xf32>, vector<128x128xf32>, vector<16x128xf32> -> vector<16x128xf32>
    %c0_9 = arith.constant 0 : index
    %c0_10 = arith.constant 0 : index
    %10 = vector.load %arg5[%c0_9, %c0_10] : memref<1x128xf32, #tpu.memory_space<vmem>>, vector<1x128xf32>
    %11 = vector.broadcast %10 : vector<1x128xf32> to vector<16x128xf32>
    %12 = arith.addf %9, %11 : vector<16x128xf32>
    %cst_11 = arith.constant 0.000000e+00 : f32
    %13 = vector.broadcast %cst_11 : f32 to vector<16x128xf32>
    %14 = arith.maximumf %12, %13 : vector<16x128xf32>
    %c0_12 = arith.constant 0 : index
    %c0_13 = arith.constant 0 : index
    %15 = vector.load %arg6[%c0_12, %c0_13] : memref<128x4xf32, #tpu.memory_space<vmem>>, vector<128x4xf32>
    %cst_14 = arith.constant dense<0.000000e+00> : vector<16x4xf32>
    %16 = tpu.matmul %14, %15, %cst_14 {dimension_numbers = #tpu.dot_dimension_numbers<[1], [0], [0], [1], [0, 0, 1, 1], [], []>} : vector<16x128xf32>, vector<128x4xf32>, vector<16x4xf32> -> vector<16x4xf32>
    %c0_15 = arith.constant 0 : index
    %c0_16 = arith.constant 0 : index
    %17 = vector.load %arg7[%c0_15, %c0_16] : memref<1x4xf32, #tpu.memory_space<vmem>>, vector<1x4xf32>
    %18 = vector.broadcast %17 : vector<1x4xf32> to vector<16x4xf32>
    %19 = arith.addf %16, %18 : vector<16x4xf32>
    %20 = math.tanh %19 : vector<16x4xf32>
    %c0_17 = arith.constant 0 : index
    %c0_18 = arith.constant 0 : index
    %21 = vector.load %arg8[%c0_17, %c0_18] : memref<16x4xf32, #tpu.memory_space<vmem>>, vector<16x4xf32>
    tpu.vector_store %arg8[%c0_17, %c0_18], %20 {strides = array<i32>} : memref<16x4xf32, #tpu.memory_space<vmem>>, vector<16x4xf32>,
    return
  }
  func.func @transform_0(%arg0: i32) -> (i32, i32) {
    %c0_i32 = arith.constant 0 : i32
    %c0_i32_0 = arith.constant 0 : i32
    return %arg0, %c0_i32 : i32, i32
  }
  func.func @transform_1(%arg0: i32) -> (i32, i32) {
    %c0_i32 = arith.constant 0 : i32
    %c0_i32_0 = arith.constant 0 : i32
    %c0_i32_1 = arith.constant 0 : i32
    return %c0_i32, %c0_i32_0 : i32, i32
  }
  func.func @transform_2(%arg0: i32) -> (i32, i32) {
    %c0_i32 = arith.constant 0 : i32
    %c0_i32_0 = arith.constant 0 : i32
    %c0_i32_1 = arith.constant 0 : i32
    return %c0_i32, %c0_i32_0 : i32, i32
  }
  func.func @transform_3(%arg0: i32) -> (i32, i32) {
    %c0_i32 = arith.constant 0 : i32
    %c0_i32_0 = arith.constant 0 : i32
    %c0_i32_1 = arith.constant 0 : i32
    return %c0_i32, %c0_i32_0 : i32, i32
  }
  func.func @transform_4(%arg0: i32) -> (i32, i32) {
    %c0_i32 = arith.constant 0 : i32
    %c0_i32_0 = arith.constant 0 : i32
    %c0_i32_1 = arith.constant 0 : i32
    return %c0_i32, %c0_i32_0 : i32, i32
  }
  func.func @transform_5(%arg0: i32) -> (i32, i32) {
    %c0_i32 = arith.constant 0 : i32
    %c0_i32_0 = arith.constant 0 : i32
    %c0_i32_1 = arith.constant 0 : i32
    return %c0_i32, %c0_i32_0 : i32, i32
  }
  func.func @transform_6(%arg0: i32) -> (i32, i32) {
    %c0_i32 = arith.constant 0 : i32
    %c0_i32_0 = arith.constant 0 : i32
    %c0_i32_1 = arith.constant 0 : i32
    return %c0_i32, %c0_i32_0 : i32, i32
  }
  func.func @transform_7(%arg0: i32) -> (i32, i32) {
    %c0_i32 = arith.constant 0 : i32
    %c0_i32_0 = arith.constant 0 : i32
    return %arg0, %c0_i32 : i32, i32
  }
}

</mosaic_0001>

<llo_original>
// kernel: tpu_custom_call.1
$region0: #{tpu_custom_call.1}
  #allocation0 [shape = 'u32[]', space=smem, size = 0x4, offset = 0x4, fixed_abs, tag = 'smem constant byte address 0x4 - core index']
  #allocation1 [shape = 'u32[144,128]{1,0:T(1,128)}', space=vmem, size = 0x12000, scoped, tag = 'internal scratch']
  %s0 = inlined_call_operand.vmem [shape: f32[32,24], index: 0, kind: input, shape index: {}]
  %s1 = inlined_call_operand.vmem [shape: f32[24,128], index: 1, kind: input, shape index: {}]
  %s2 = inlined_call_operand.vmem [shape: f32[1,128], index: 2, kind: input, shape index: {}]
  %s3 = inlined_call_operand.vmem [shape: f32[128,128], index: 3, kind: input, shape index: {}]
  %s4 = inlined_call_operand.vmem [shape: f32[1,128], index: 4, kind: input, shape index: {}]
  %s5 = inlined_call_operand.vmem [shape: f32[128,4], index: 5, kind: input, shape index: {}]
  %s6 = inlined_call_operand.vmem [shape: f32[1,4], index: 6, kind: input, shape index: {}]
  %s7 = inlined_call_operand.vmem [shape: f32[32,4], index: 7, kind: output, shape index: {}]
  %s8 = sld [smem:[#allocation0]]
  $region61: #{tpu_custom_call.1} parent=0
    _
  %s10 = ssub.s32 1, %s8
  %s11 = scalar_select 0, %s10, %s8
  loop: start=0, step=1, limit=4
  $region2: #{tpu_custom_call.1} parent=0 // loop_pre_header
    _
  $region3: #{tpu_custom_call.1} parent=0 // loop_header
    %s13 = sphi 0, %s17
    %p14 = scmp.ge.s32.totalorder %s13, 4
    %s23 = sphi 0, %s25
    %s26 = sphi 0, %s23
    %s27 = sphi 0, %s26
    %s43 = sphi 0, %s27
    %s47 = sphi 0, %s47
    %s49 = sphi 0, %s47
    %s50 = sphi 0, %s49
    %s64 = sphi 0, %s50
    %s68 = sphi 0, %s68
    %s70 = sphi 0, %s68
    %s71 = sphi 0, %s70
    %s85 = sphi 0, %s71
    %s89 = sphi 0, %s89
    %s91 = sphi 0, %s89
    %s92 = sphi 0, %s91
    %s106 = sphi 0, %s92
    %s110 = sphi 0, %s110
    %s112 = sphi 0, %s110
    %s113 = sphi 0, %s112
    %s127 = sphi 0, %s113
    %s131 = sphi 0, %s131
    %s133 = sphi 0, %s131
    %s134 = sphi 0, %s133
    %s148 = sphi 0, %s134
    %s152 = sphi 0, %s152
    %s154 = sphi 0, %s152
    %s155 = sphi 0, %s154
    %s169 = sphi 0, %s155
    %s175 = sphi 0, %s177
    %s178 = sphi 0, %s175
    %s179 = sphi 0, %s178
    %s195 = sphi 0, %s179
  $region4: #{tpu_custom_call.1} parent=0 // loop_header_branch
    %16 = sbr.rel (%p14) target = $region8
  $region5: #{tpu_custom_call.1} parent=0 // loop_body
    %s18 = ssub.s32 %s13, 1
    %s19 = ssub.s32 %s13, 2
    %s20 = sadd.s32 %s13, 1
    %s21 = ssub.s32 %s13, %s20
    %p22 = scmp.eq.s32.totalorder %s21, 0
    %s24 = sadd.s32 %s23, 1
    %s25 = scalar_select %p22, %s23, %s24
    %p28 = pneg %p22
    %p29 = scmp.eq.s32.totalorder %s13, 1
    %p30 = por %p28, %p29
    %p31 = scmp.ne.s32.totalorder %s23, %s26
    %p32 = scmp.eq.s32.totalorder %s13, 0
    %p33 = por %p31, %p32
    %p34 = scmp.ne.s32.totalorder %s23, %s26
    %p35 = scmp.eq.s32.totalorder %s18, 1
    %p36 = por %p34, %p35
    %p37 = scmp.ne.s32.totalorder %s26, %s27
    %p38 = scmp.eq.s32.totalorder %s18, 0
    %p39 = por %p37, %p38
    %p40 = scmp.ne.s32.totalorder %s26, %s27
    %p41 = scmp.eq.s32.totalorder %s19, 1
    %p42 = por %p40, %p41
    %p44 = scmp.ne.s32.totalorder %s27, %s43
    %p45 = scmp.eq.s32.totalorder %s19, 0
    %p46 = por %p44, %p45
    %s48 = sadd.s32 %s47, 1
    %p51 = scmp.eq.s32.totalorder %s13, 1
    %p52 = scmp.ne.s32.totalorder %s47, %s49
    %p53 = scmp.eq.s32.totalorder %s13, 0
    %p54 = por %p52, %p53
    %p55 = scmp.ne.s32.totalorder %s47, %s49
    %p56 = scmp.eq.s32.totalorder %s18, 1
    %p57 = por %p55, %p56
    %p58 = scmp.ne.s32.totalorder %s49, %s50
    %p59 = scmp.eq.s32.totalorder %s18, 0
    %p60 = por %p58, %p59
    %p61 = scmp.ne.s32.totalorder %s49, %s50
    %p62 = scmp.eq.s32.totalorder %s19, 1
    %p63 = por %p61, %p62
    %p65 = scmp.ne.s32.totalorder %s50, %s64
    %p66 = scmp.eq.s32.totalorder %s19, 0
    %p67 = por %p65, %p66
    %s69 = sadd.s32 %s68, 1
    %p72 = scmp.eq.s32.totalorder %s13, 1
    %p73 = scmp.ne.s32.totalorder %s68, %s70
    %p74 = scmp.eq.s32.totalorder %s13, 0
    %p75 = por %p73, %p74
    %p76 = scmp.ne.s32.totalorder %s68, %s70
    %p77 = scmp.eq.s32.totalorder %s18, 1
    %p78 = por %p76, %p77
    %p79 = scmp.ne.s32.totalorder %s70, %s71
    %p80 = scmp.eq.s32.totalorder %s18, 0
    %p81 = por %p79, %p80
    %p82 = scmp.ne.s32.totalorder %s70, %s71
    %p83 = scmp.eq.s32.totalorder %s19, 1
    %p84 = por %p82, %p83
    %p86 = scmp.ne.s32.totalorder %s71, %s85
    %p87 = scmp.eq.s32.totalorder %s19, 0
    %p88 = por %p86, %p87
    %s90 = sadd.s32 %s89, 1
    %p93 = scmp.eq.s32.totalorder %s13, 1
    %p94 = scmp.ne.s32.totalorder %s89, %s91
    %p95 = scmp.eq.s32.totalorder %s13, 0
    %p96 = por %p94, %p95
    %p97 = scmp.ne.s32.totalorder %s89, %s91
    %p98 = scmp.eq.s32.totalorder %s18, 1
    %p99 = por %p97, %p98
    %p100 = scmp.ne.s32.totalorder %s91, %s92
    %p101 = scmp.eq.s32.totalorder %s18, 0
    %p102 = por %p100, %p101
    %p103 = scmp.ne.s32.totalorder %s91, %s92
    %p104 = scmp.eq.s32.totalorder %s19, 1
    %p105 = por %p103, %p104
    %p107 = scmp.ne.s32.totalorder %s92, %s106
    %p108 = scmp.eq.s32.totalorder %s19, 0
    %p109 = por %p107, %p108
    %s111 = sadd.s32 %s110, 1
    %p114 = scmp.eq.s32.totalorder %s13, 1
    %p115 = scmp.ne.s32.totalorder %s110, %s112
    %p116 = scmp.eq.s32.totalorder %s13, 0
    %p117 = por %p115, %p116
    %p118 = scmp.ne.s32.totalorder %s110, %s112
    %p119 = scmp.eq.s32.totalorder %s18, 1
    %p120 = por %p118, %p119
    %p121 = scmp.ne.s32.totalorder %s112, %s113
    %p122 = scmp.eq.s32.totalorder %s18, 0
    %p123 = por %p121, %p122
    %p124 = scmp.ne.s32.totalorder %s112, %s113
    %p125 = scmp.eq.s32.totalorder %s19, 1
    %p126 = por %p124, %p125
    %p128 = scmp.ne.s32.totalorder %s113, %s127
    %p129 = scmp.eq.s32.totalorder %s19, 0
    %p130 = por %p128, %p129
    %s132 = sadd.s32 %s131, 1
    %p135 = scmp.eq.s32.totalorder %s13, 1
    %p136 = scmp.ne.s32.totalorder %s131, %s133
    %p137 = scmp.eq.s32.totalorder %s13, 0
    %p138 = por %p136, %p137
    %p139 = scmp.ne.s32.totalorder %s131, %s133
    %p140 = scmp.eq.s32.totalorder %s18, 1
    %p141 = por %p139, %p140
    %p142 = scmp.ne.s32.totalorder %s133, %s134
    %p143 = scmp.eq.s32.totalorder %s18, 0
    %p144 = por %p142, %p143
    %p145 = scmp.ne.s32.totalorder %s133, %s134
    %p146 = scmp.eq.s32.totalorder %s19, 1
    %p147 = por %p145, %p146
    %p149 = scmp.ne.s32.totalorder %s134, %s148
    %p150 = scmp.eq.s32.totalorder %s19, 0
    %p151 = por %p149, %p150
    %s153 = sadd.s32 %s152, 1
    %p156 = scmp.eq.s32.totalorder %s13, 1
    %p157 = scmp.ne.s32.totalorder %s152, %s154
    %p158 = scmp.eq.s32.totalorder %s13, 0
    %p159 = por %p157, %p158
    %p160 = scmp.ne.s32.totalorder %s152, %s154
    %p161 = scmp.eq.s32.totalorder %s18, 1
    %p162 = por %p160, %p161
    %p163 = scmp.ne.s32.totalorder %s154, %s155
    %p164 = scmp.eq.s32.totalorder %s18, 0
    %p165 = por %p163, %p164
    %p166 = scmp.ne.s32.totalorder %s154, %s155
    %p167 = scmp.eq.s32.totalorder %s19, 1
    %p168 = por %p166, %p167
    %p170 = scmp.ne.s32.totalorder %s155, %s169
    %p171 = scmp.eq.s32.totalorder %s19, 0
    %p172 = por %p170, %p171
    %s173 = ssub.s32 %s13, %s20
    %p174 = scmp.eq.s32.totalorder %s173, 0
    %s176 = sadd.s32 %s175, 1
    %s177 = scalar_select %p174, %s175, %s176
    %p180 = pneg %p174
    %p181 = scmp.eq.s32.totalorder %s13, 1
    %p182 = por %p180, %p181
    %p183 = scmp.ne.s32.totalorder %s175, %s178
    %p184 = scmp.eq.s32.totalorder %s13, 0
    %p185 = por %p183, %p184
    %p186 = scmp.ne.s32.totalorder %s175, %s178
    %p187 = scmp.eq.s32.totalorder %s18, 1
    %p188 = por %p186, %p187
    %p189 = scmp.ne.s32.totalorder %s178, %s179
    %p190 = scmp.eq.s32.totalorder %s18, 0
    %p191 = por %p189, %p190
    %p192 = scmp.ne.s32.totalorder %s178, %s179
    %p193 = scmp.eq.s32.totalorder %s19, 1
    %p194 = por %p192, %p193
    %p196 = scmp.ne.s32.totalorder %s179, %s195
    %p197 = scmp.eq.s32.totalorder %s19, 0
    %p198 = por %p196, %p197
    %p199 = scmp.le.s32.totalorder 1, %s13
    %p200 = scmp.lt.s32.totalorder %s13, 3
    %p201 = pnand %p199, %p200
    %p202 = pneg %p201
    // Predicated region
    $region9: #{tpu_custom_call.1} parent=5 // pred_check
      _
    $region10: #{tpu_custom_call.1} parent=5 // pred_check_branch
      %204 = sbr.rel (%p201) target = $region12
    $region11: #{tpu_custom_call.1} parent=5 // pred_region
      %s205 = ssub.s32 %s13, 1
      // Predicated region
      $region13: #{tpu_custom_call.1} parent=11 // pred_check
        %p206 = pneg %p60
      $region14: #{tpu_custom_call.1} parent=11 // pred_check_branch
        %208 = sbr.rel (%p206) target = $region16
      $region15: #{tpu_custom_call.1} parent=11 // pred_region
        _
      $region16: #{tpu_custom_call.1} parent=11 // pred_fallthru
        _
      // Predicated region
      $region17: #{tpu_custom_call.1} parent=11 // pred_check
        %p209 = pneg %p81
      $region18: #{tpu_custom_call.1} parent=11 // pred_check_branch
        %211 = sbr.rel (%p209) target = $region20
      $region19: #{tpu_custom_call.1} parent=11 // pred_region
        _
      $region20: #{tpu_custom_call.1} parent=11 // pred_fallthru
        _
      // Predicated region
      $region21: #{tpu_custom_call.1} parent=11 // pred_check
        %p212 = pneg %p102
      $region22: #{tpu_custom_call.1} parent=11 // pred_check_branch
        %214 = sbr.rel (%p212) target = $region24
      $region23: #{tpu_custom_call.1} parent=11 // pred_region
        _
      $region24: #{tpu_custom_call.1} parent=11 // pred_fallthru
        _
      // Predicated region
      $region25: #{tpu_custom_call.1} parent=11 // pred_check
        %p215 = pneg %p123
      $region26: #{tpu_custom_call.1} parent=11 // pred_check_branch
        %217 = sbr.rel (%p215) target = $region28
      $region27: #{tpu_custom_call.1} parent=11 // pred_region
        _
      $region28: #{tpu_custom_call.1} parent=11 // pred_fallthru
        _
      // Predicated region
      $region29: #{tpu_custom_call.1} parent=11 // pred_check
        %p218 = pneg %p144
      $region30: #{tpu_custom_call.1} parent=11 // pred_check_branch
        %220 = sbr.rel (%p218) target = $region32
      $region31: #{tpu_custom_call.1} parent=11 // pred_region
        _
      $region32: #{tpu_custom_call.1} parent=11 // pred_fallthru
        _
      // Predicated region
      $region33: #{tpu_custom_call.1} parent=11 // pred_check
        %p221 = pneg %p165
      $region34: #{tpu_custom_call.1} parent=11 // pred_check_branch
        %223 = sbr.rel (%p221) target = $region36
      $region35: #{tpu_custom_call.1} parent=11 // pred_region
        _
      $region36: #{tpu_custom_call.1} parent=11 // pred_fallthru
        _
    $region12: #{tpu_custom_call.1} parent=5 // pred_fallthru
      _
    %p224 = scmp.lt.s32.totalorder %s13, 2
    // Predicated region
    $region37: #{tpu_custom_call.1} parent=5 // pred_check
      %p225 = pneg %p224
    $region38: #{tpu_custom_call.1} parent=5 // pred_check_branch
      %227 = sbr.rel (%p225) target = $region40
    $region39: #{tpu_custom_call.1} parent=5 // pred_region
      // Predicated region
      $region41: #{tpu_custom_call.1} parent=39 // pred_check
        %p228 = pneg %p33
      $region42: #{tpu_custom_call.1} parent=39 // pred_check_branch
        %230 = sbr.rel (%p228) target = $region44
      $region43: #{tpu_custom_call.1} parent=39 // pred_region
        %s231 = smul.u32 2, %s13
        %p232 = scmp.lt.s32.totalorder %s231, 3
        %s233 = scalar_select %p232, %s231, 3
        %s234 = smul.addr %s233, 8
        %s235 = scalar_lea.vmem %s0, %s234
        %s236 = smul.u32 2, %s13
      $region44: #{tpu_custom_call.1} parent=39 // pred_fallthru
        _
    $region40: #{tpu_custom_call.1} parent=5 // pred_fallthru
      _
    %p237 = scmp.le.s32.totalorder 1, %s13
    %p238 = scmp.lt.s32.totalorder %s13, 3
    %p239 = pnand %p237, %p238
    %p240 = pneg %p239
    // Predicated region
    $region45: #{tpu_custom_call.1} parent=5 // pred_check
      _
    $region46: #{tpu_custom_call.1} parent=5 // pred_check_branch
      %242 = sbr.rel (%p239) target = $region48
    $region47: #{tpu_custom_call.1} parent=5 // pred_region
      %s243 = ssub.s32 %s13, 1
      %s244 = smul.u32 2, %s18
      %p245 = scmp.lt.s32.totalorder %s244, 3
      %s246 = scalar_select %p245, %s244, 3
      %s247 = smul.addr %s246, 8
      %s248 = scalar_lea.vmem %s0, %s247
      %p249 = pneg %p39
      %p250 = pneg %p36
      %p251 = pneg %p60
      %p252 = pneg %p57
      %p253 = pneg %p81
      %p254 = pneg %p78
      %p255 = pneg %p102
      %p256 = pneg %p99
      %p257 = pneg %p123
      %p258 = pneg %p120
      %p259 = pneg %p144
      %p260 = pneg %p141
      %p261 = pneg %p165
      %p262 = pneg %p162
      %p263 = pneg %p191
      %p264 = pneg %p188
      %s265 = smul.u32 2, %s18
      %p266 = scmp.lt.s32.totalorder %s265, 3
      %s267 = scalar_select %p266, %s265, 3
      %s268 = smul.addr %s267, 8
      %s269 = scalar_lea.vmem %s7, %s268
      %s270 = smul.u32 2, %s18
      %p271 = scmp.lt.s32.totalorder %s270, 3
      %s272 = scalar_select %p271, %s270, 3
      %s273 = smul.addr %s272, 8
      %s274 = scalar_lea.vmem %s0, %s273
      %s275 = smul.u32 2, %s18
      %s276 = smul.u32 2, %s18
      %p277 = scmp.lt.s32.totalorder %s276, 3
      %s278 = scalar_select %p277, %s276, 3
      %s279 = smul.addr %s278, 8
      %s280 = scalar_lea.vmem %s7, %s279
      %s281 = smul.u32 2, %s18
      %v282 = vld [vmem:[%s274] sm:$0xff]
      %v283 = vld [vmem:[%s274 + $0x8] sm:$0xff]
      %v284 = vld [vmem:[%s1] sm:$0xff]
      %v285 = vld [vmem:[%s1 + $0x8] sm:$0xff]
      %v286 = vld [vmem:[%s1 + $0x10] sm:$0xff]
      %v287 = vld [vmem:[%s2] sm:$0x1]
      %v289 = vlaneseq
      %v290 = vshrl.u32 %v289, 7
      %v291 = vsub.s32 0, %v290
      %v292 = vrot.slane %v287, %v291
      %vm294 = vcmask 195584
      %v296 = vsel %vm294, %v282, 0
      %v299 = vsel %vm294, %v283, 0
      %301 = vmatprep.subr.mxu0 0.0
      %302 = vmatpush1.msra.mxu0 0.0
      %303 = vmatprep.subr.mxu0 0.0
      %304 = vmatpush1.msra.mxu0 0.0
      %305 = vmatprep.subr.mxu0 0.0
      %306 = vmatpush1.msra.mxu0 0.0
      %307 = vmatprep.subr.mxu0 0.0
      %308 = vmatpush1.msra.mxu0 0.0
      %309 = vmatprep.subr.mxu0 0.0
      %310 = vmatpush1.msra.mxu0 0.0
      %311 = vmatprep.subr.mxu0 0.0
      %312 = vmatpush1.msra.mxu0 0.0
      %313 = vmatprep.subr.mxu0 0.0
      %314 = vmatpush1.msra.mxu0 0.0
      %315 = vmatprep.subr.mxu0 0.0
      %316 = vmatpush1.msra.mxu0 0.0
      %317 = vmatprep.subr.mxu0 0.0
      %318 = vmatpush1.msra.mxu0 0.0
      %319 = vmatprep.subr.mxu0 0.0
      %320 = vmatpush1.msra.mxu0 0.0
      %321 = vmatprep.subr.mxu0 0.0
      %322 = vmatpush1.msra.mxu0 0.0
      %323 = vmatprep.subr.mxu0 0.0
      %324 = vmatpush1.msra.mxu0 0.0
      %325 = vmatprep.subr.mxu0 0.0
      %326 = vmatpush1.msra.mxu0 0.0
      %327 = vmatprep.subr.mxu0 0.0
      %328 = vmatpush1.msra.mxu0 %v286
      %329 = vmatprep.subr.mxu0 0.0
      %330 = vmatpush1.msra.mxu0 %v285
      %331 = vmatprep.subr.mxu0 0.0
      %332 = vmatpush1.msra.mxu0 %v284
      %333 = vmatprep.subr.mxu0 0.0
      %334 = vmatpush2.msra.mxu0 0.0
      %335 = vmatprep.subr.mxu0 0.0
      %336 = vmatpush2.msra.mxu0 0.0
      %337 = vmatprep.subr.mxu0 0.0
      %338 = vmatpush2.msra.mxu0 0.0
      %339 = vmatprep.subr.mxu0 0.0
      %340 = vmatpush2.msra.mxu0 0.0
      %341 = vmatprep.subr.mxu0 0.0
      %342 = vmatpush2.msra.mxu0 0.0
      %343 = vmatprep.subr.mxu0 0.0
      %344 = vmatpush2.msra.mxu0 0.0
      %345 = vmatprep.subr.mxu0 0.0
      %346 = vmatpush2.msra.mxu0 0.0
      %347 = vmatprep.subr.mxu0 0.0
      %348 = vmatpush2.msra.mxu0 0.0
      %349 = vmatprep.subr.mxu0 0.0
      %350 = vmatpush2.msra.mxu0 0.0
      %351 = vmatprep.subr.mxu0 0.0
      %352 = vmatpush2.msra.mxu0 0.0
      %353 = vmatprep.subr.mxu0 0.0
      %354 = vmatpush2.msra.mxu0 0.0
      %355 = vmatprep.subr.mxu0 0.0
      %356 = vmatpush2.msra.mxu0 0.0
      %357 = vmatprep.subr.mxu0 0.0
      %358 = vmatpush2.msra.mxu0 0.0
      %359 = vmatprep.subr.mxu0 0.0
      %360 = vmatpush2.msra.mxu0 0.0
      %361 = vmatprep.subr.mxu0 0.0
      %362 = vmatpush2.msra.mxu0 0.0
      %363 = vmatprep.subr.mxu0 0.0
      %364 = vmatpush2.msra.mxu0 0.0
      %365 = vmatprep.mubr.f32.mxu0 0.0
      %366 = vmatmul.mubr.f32.gmra.mxu0 %v296
      %v367 = vpop.f32.mrf.mxu0
      %v368 = vadd.f32 %v292, %v367
      %v369 = vpop.f32.mrf.mxu0
      %370 = vmatprep.mubr.f32.mxu0 0.0
      %371 = vmatmul.mubr.f32.gmra.mxu0 %v299
      %v372 = vpop.f32.mrf.mxu0
      %v373 = vadd.f32 %v292, %v372
      %v374 = vpop.f32.mrf.mxu0
      %375 = vdwg.mxu0
      %v376 = vmax.f32 %v368, 0.0
      %v377 = vmax.f32 %v373, 0.0
      %v378 = vld [vmem:[%s3] sm:$0xff]
      %v379 = vld [vmem:[%s3 + $0x8] sm:$0xff]
      %v380 = vld [vmem:[%s3 + $0x10] sm:$0xff]
      %v381 = vld [vmem:[%s3 + $0x18] sm:$0xff]
      %v382 = vld [vmem:[%s3 + $0x20] sm:$0xff]
      %v383 = vld [vmem:[%s3 + $0x28] sm:$0xff]
      %v384 = vld [vmem:[%s3 + $0x30] sm:$0xff]
      %v385 = vld [vmem:[%s3 + $0x38] sm:$0xff]
      %v386 = vld [vmem:[%s3 + $0x40] sm:$0xff]
      %v387 = vld [vmem:[%s3 + $0x48] sm:$0xff]
      %v388 = vld [vmem:[%s3 + $0x50] sm:$0xff]
      %v389 = vld [vmem:[%s3 + $0x58] sm:$0xff]
      %v390 = vld [vmem:[%s3 + $0x60] sm:$0xff]
      %v391 = vld [vmem:[%s3 + $0x68] sm:$0xff]
      %v392 = vld [vmem:[%s3 + $0x70] sm:$0xff]
      %v393 = vld [vmem:[%s3 + $0x78] sm:$0xff]
      %v394 = vld [vmem:[%s4] sm:$0x1]
      %v396 = vlaneseq
      %v397 = vshrl.u32 %v396, 7
      %v398 = vsub.s32 0, %v397
      %v399 = vrot.slane %v394, %v398
      %401 = vmatprep.subr.mxu0 0.0
      %402 = vmatpush1.msra.mxu0 %v393
      %403 = vmatprep.subr.mxu0 0.0
      %404 = vmatpush1.msra.mxu0 %v392
      %405 = vmatprep.subr.mxu0 0.0
      %406 = vmatpush1.msra.mxu0 %v391
      %407 = vmatprep.subr.mxu0 0.0
      %408 = vmatpush1.msra.mxu0 %v390
      %409 = vmatprep.subr.mxu0 0.0
      %410 = vmatpush1.msra.mxu0 %v389
      %411 = vmatprep.subr.mxu0 0.0
      %412 = vmatpush1.msra.mxu0 %v388
      %413 = vmatprep.subr.mxu0 0.0
      %414 = vmatpush1.msra.mxu0 %v387
      %415 = vmatprep.subr.mxu0 0.0
      %416 = vmatpush1.msra.mxu0 %v386
      %417 = vmatprep.subr.mxu0 0.0
      %418 = vmatpush1.msra.mxu0 %v385
      %419 = vmatprep.subr.mxu0 0.0
      %420 = vmatpush1.msra.mxu0 %v384
      %421 = vmatprep.subr.mxu0 0.0
      %422 = vmatpush1.msra.mxu0 %v383
      %423 = vmatprep.subr.mxu0 0.0
      %424 = vmatpush1.msra.mxu0 %v382
      %425 = vmatprep.subr.mxu0 0.0
      %426 = vmatpush1.msra.mxu0 %v381
      %427 = vmatprep.subr.mxu0 0.0
      %428 = vmatpush1.msra.mxu0 %v380
      %429 = vmatprep.subr.mxu0 0.0
      %430 = vmatpush1.msra.mxu0 %v379
      %431 = vmatprep.subr.mxu0 0.0
      %432 = vmatpush1.msra.mxu0 %v378
      %433 = vmatprep.subr.mxu0 0.0
      %434 = vmatpush2.msra.mxu0 0.0
      %435 = vmatprep.subr.mxu0 0.0
      %436 = vmatpush2.msra.mxu0 0.0
      %437 = vmatprep.subr.mxu0 0.0
      %438 = vmatpush2.msra.mxu0 0.0
      %439 = vmatprep.subr.mxu0 0.0
      %440 = vmatpush2.msra.mxu0 0.0
      %441 = vmatprep.subr.mxu0 0.0
      %442 = vmatpush2.msra.mxu0 0.0
      %443 = vmatprep.subr.mxu0 0.0
      %444 = vmatpush2.msra.mxu0 0.0
      %445 = vmatprep.subr.mxu0 0.0
      %446 = vmatpush2.msra.mxu0 0.0
      %447 = vmatprep.subr.mxu0 0.0
      %448 = vmatpush2.msra.mxu0 0.0
      %449 = vmatprep.subr.mxu0 0.0
      %450 = vmatpush2.msra.mxu0 0.0
      %451 = vmatprep.subr.mxu0 0.0
      %452 = vmatpush2.msra.mxu0 0.0
      %453 = vmatprep.subr.mxu0 0.0
      %454 = vmatpush2.msra.mxu0 0.0
      %455 = vmatprep.subr.mxu0 0.0
      %456 = vmatpush2.msra.mxu0 0.0
      %457 = vmatprep.subr.mxu0 0.0
      %458 = vmatpush2.msra.mxu0 0.0
      %459 = vmatprep.subr.mxu0 0.0
      %460 = vmatpush2.msra.mxu0 0.0
      %461 = vmatprep.subr.mxu0 0.0
      %462 = vmatpush2.msra.mxu0 0.0
      %463 = vmatprep.subr.mxu0 0.0
      %464 = vmatpush2.msra.mxu0 0.0
      %465 = vmatprep.mubr.f32.mxu0 0.0
      %466 = vmatmul.mubr.f32.gmra.mxu0 %v376
      %v467 = vpop.f32.mrf.mxu0
      %v468 = vadd.f32 %v399, %v467
      %v469 = vpop.f32.mrf.mxu0
      %470 = vmatprep.mubr.f32.mxu0 0.0
      %471 = vmatmul.mubr.f32.gmra.mxu0 %v377
      %v472 = vpop.f32.mrf.mxu0
      %v473 = vadd.f32 %v399, %v472
      %v474 = vpop.f32.mrf.mxu0
      %475 = vdwg.mxu0
      %v476 = vmax.f32 %v468, 0.0
      %v477 = vmax.f32 %v473, 0.0
      %v478 = vld [vmem:[%s5] sm:$0xff]
      %v479 = vld [vmem:[%s5 + $0x8] sm:$0xff]
      %v480 = vld [vmem:[%s5 + $0x10] sm:$0xff]
      %v481 = vld [vmem:[%s5 + $0x18] sm:$0xff]
      %v482 = vld [vmem:[%s5 + $0x20] sm:$0xff]
      %v483 = vld [vmem:[%s5 + $0x28] sm:$0xff]
      %v484 = vld [vmem:[%s5 + $0x30] sm:$0xff]
      %v485 = vld [vmem:[%s5 + $0x38] sm:$0xff]
      %v486 = vld [vmem:[%s5 + $0x40] sm:$0xff]
      %v487 = vld [vmem:[%s5 + $0x48] sm:$0xff]
      %v488 = vld [vmem:[%s5 + $0x50] sm:$0xff]
      %v489 = vld [vmem:[%s5 + $0x58] sm:$0xff]
      %v490 = vld [vmem:[%s5 + $0x60] sm:$0xff]
      %v491 = vld [vmem:[%s5 + $0x68] sm:$0xff]
      %v492 = vld [vmem:[%s5 + $0x70] sm:$0xff]
      %v493 = vld [vmem:[%s5 + $0x78] sm:$0xff]
      %v494 = vld [vmem:[%s6] sm:$0x1]
      %v496 = vlaneseq
      %v497 = vshrl.u32 %v496, 7
      %v498 = vsub.s32 0, %v497
      %v499 = vrot.slane %v494, %v498
      %501 = vmatprep.subr.mxu0 0.0
      %502 = vmatpush1.msra.mxu0 %v493
      %503 = vmatprep.subr.mxu0 0.0
      %504 = vmatpush1.msra.mxu0 %v492
      %505 = vmatprep.subr.mxu0 0.0
      %506 = vmatpush1.msra.mxu0 %v491
      %507 = vmatprep.subr.mxu0 0.0
      %508 = vmatpush1.msra.mxu0 %v490
      %509 = vmatprep.subr.mxu0 0.0
      %510 = vmatpush1.msra.mxu0 %v489
      %511 = vmatprep.subr.mxu0 0.0
      %512 = vmatpush1.msra.mxu0 %v488
      %513 = vmatprep.subr.mxu0 0.0
      %514 = vmatpush1.msra.mxu0 %v487
      %515 = vmatprep.subr.mxu0 0.0
      %516 = vmatpush1.msra.mxu0 %v486
      %517 = vmatprep.subr.mxu0 0.0
      %518 = vmatpush1.msra.mxu0 %v485
      %519 = vmatprep.subr.mxu0 0.0
      %520 = vmatpush1.msra.mxu0 %v484
      %521 = vmatprep.subr.mxu0 0.0
      %522 = vmatpush1.msra.mxu0 %v483
      %523 = vmatprep.subr.mxu0 0.0
      %524 = vmatpush1.msra.mxu0 %v482
      %525 = vmatprep.subr.mxu0 0.0
      %526 = vmatpush1.msra.mxu0 %v481
      %527 = vmatprep.subr.mxu0 0.0
      %528 = vmatpush1.msra.mxu0 %v480
      %529 = vmatprep.subr.mxu0 0.0
      %530 = vmatpush1.msra.mxu0 %v479
      %531 = vmatprep.subr.mxu0 0.0
      %532 = vmatpush1.msra.mxu0 %v478
      %533 = vmatprep.subr.mxu0 0.0
      %534 = vmatpush2.msra.mxu0 0.0
      %535 = vmatprep.subr.mxu0 0.0
      %536 = vmatpush2.msra.mxu0 0.0
      %537 = vmatprep.subr.mxu0 0.0
      %538 = vmatpush2.msra.mxu0 0.0
      %539 = vmatprep.subr.mxu0 0.0
      %540 = vmatpush2.msra.mxu0 0.0
      %541 = vmatprep.subr.mxu0 0.0
      %542 = vmatpush2.msra.mxu0 0.0
      %543 = vmatprep.subr.mxu0 0.0
      %544 = vmatpush2.msra.mxu0 0.0
      %545 = vmatprep.subr.mxu0 0.0
      %546 = vmatpush2.msra.mxu0 0.0
      %547 = vmatprep.subr.mxu0 0.0
      %548 = vmatpush2.msra.mxu0 0.0
      %549 = vmatprep.subr.mxu0 0.0
      %550 = vmatpush2.msra.mxu0 0.0
      %551 = vmatprep.subr.mxu0 0.0
      %552 = vmatpush2.msra.mxu0 0.0
      %553 = vmatprep.subr.mxu0 0.0
      %554 = vmatpush2.msra.mxu0 0.0
      %555 = vmatprep.subr.mxu0 0.0
      %556 = vmatpush2.msra.mxu0 0.0
      %557 = vmatprep.subr.mxu0 0.0
      %558 = vmatpush2.msra.mxu0 0.0
      %559 = vmatprep.subr.mxu0 0.0
      %560 = vmatpush2.msra.mxu0 0.0
      %561 = vmatprep.subr.mxu0 0.0
      %562 = vmatpush2.msra.mxu0 0.0
      %563 = vmatprep.subr.mxu0 0.0
      %564 = vmatpush2.msra.mxu0 0.0
      %565 = vmatprep.mubr.f32.mxu0 0.0
      %566 = vmatmul.mubr.f32.gmra.mxu0 %v476
      %v567 = vpop.f32.mrf.mxu0
      %v568 = vadd.f32 %v499, %v567
      %v569 = vpop.f32.mrf.mxu0
      %570 = vmatprep.mubr.f32.mxu0 0.0
      %571 = vmatmul.mubr.f32.gmra.mxu0 %v477
      %v572 = vpop.f32.mrf.mxu0
      %v573 = vadd.f32 %v499, %v572
      %v574 = vpop.f32.mrf.mxu0
      %575 = vdwg.mxu0
      %v576 = vtanh.pop %v568
      %v577 = vtanh.pop %v573
      %vm578 = vcmask 31744
      %579 = vst.msk [vmem:[%s280] sm:$0xff] %vm578, %v576
      %580 = vst.msk [vmem:[%s280 + $0x8] sm:$0xff] %vm578, %v577
      %s581 = smul.u32 2, %s18
      %p582 = scmp.lt.s32.totalorder %s581, 3
      %s583 = scalar_select %p582, %s581, 3
      %s584 = smul.addr %s583, 8
      %s585 = scalar_lea.vmem %s7, %s584
      // Predicated region
      $region49: #{tpu_custom_call.1} parent=47 // pred_check
        %p586 = pneg %p188
      $region50: #{tpu_custom_call.1} parent=47 // pred_check_branch
        %588 = sbr.rel (%p586) target = $region52
      $region51: #{tpu_custom_call.1} parent=47 // pred_region
        %s589 = smul.u32 2, %s18
      $region52: #{tpu_custom_call.1} parent=47 // pred_fallthru
        _
    $region48: #{tpu_custom_call.1} parent=5 // pred_fallthru
      _
    %p590 = scmp.le.s32.totalorder 2, %s13
    // Predicated region
    $region53: #{tpu_custom_call.1} parent=5 // pred_check
      %p591 = pneg %p590
    $region54: #{tpu_custom_call.1} parent=5 // pred_check_branch
      %593 = sbr.rel (%p591) target = $region56
    $region55: #{tpu_custom_call.1} parent=5 // pred_region
      %s594 = ssub.s32 %s13, 2
      // Predicated region
      $region57: #{tpu_custom_call.1} parent=55 // pred_check
        %p595 = pneg %p194
      $region58: #{tpu_custom_call.1} parent=55 // pred_check_branch
        %597 = sbr.rel (%p595) target = $region60
      $region59: #{tpu_custom_call.1} parent=55 // pred_region
        %s598 = smul.u32 2, %s19
        %p599 = scmp.lt.s32.totalorder %s598, 3
        %s600 = scalar_select %p599, %s598, 3
        %s601 = smul.addr %s600, 8
        %s602 = scalar_lea.vmem %s7, %s601
      $region60: #{tpu_custom_call.1} parent=55 // pred_fallthru
        _
    $region56: #{tpu_custom_call.1} parent=5 // pred_fallthru
      _
  $region6: #{tpu_custom_call.1} parent=0 // loop_footer
    %s17 = sadd.s32 1, %s13
  $region7: #{tpu_custom_call.1} parent=0 // loop_footer_branch
    %12 = sbr.rel target = $region3
  $region8: #{tpu_custom_call.1} parent=0 // loop_exit
    _

</llo_original>
